<compile_context>
chip_gen: v5e
topology: v5e:2x2
jax: 0.10.0
libtpu: 0.0.40
codegen_flags: <defaults>
</compile_context>

<pallas_src>
import functools

import jax
import jax.numpy as jnp
from jax.experimental import pallas as pl
from jax.experimental.pallas import tpu as pltpu


def _round_up(v, m):
    return ((v + m - 1) // m) * m


def _choose_tiling(n, max_tile):
    n128 = _round_up(n, 128)
    tile = min(max_tile, n128)
    # Megacore guard: keep >= 2 row tiles when the node dim allows it, so the
    # "parallel" row axis can shard across both v7x TensorCores.
    if n128 > 128 and _round_up(n, tile) // tile < 2:
        tile = max(128, _round_up(tile // 2, 128))
    n_pad = _round_up(n, tile)
    return tile, n_pad


# --------------------------------------------------------------------------
# Stage 1: XW = (D^-1/2 X) @ W^T   (bf16 MXU operands, f32 accum, bf16 out)
# --------------------------------------------------------------------------
def _xw_kernel(x_ref, wt_ref, o_ref):
    o_ref[...] = jnp.dot(
        x_ref[...], wt_ref[...], preferred_element_type=jnp.float32
    ).astype(o_ref.dtype)


# --------------------------------------------------------------------------
# Stage 2: out = PReLU( D^-1/2 (A+I) @ XW + b )
#   grid = (row tiles i, reduction tiles k); accumulate directly in the
#   k-resident f32 output block; block-sparse skip of all-zero A blocks.
# --------------------------------------------------------------------------
def _aggregate_kernel(cid_ref, cnt_ref, a_ref, xw_ref, dsr_ref, b_ref,
                      alpha_ref, o_ref, *, tile, n_k, xw_resident):
    i = pl.program_id(0)
    k = pl.program_id(1)

    @pl.when(k == 0)
    def _():
        o_ref[...] = jnp.zeros_like(o_ref)

    @pl.when(k < cnt_ref[i])            # skip padded (all-zero) column blocks
    def _():
        if xw_resident:
            col = cid_ref[i * n_k + k]
            row0 = pl.multiple_of(col * tile, tile)
            xw = xw_ref[pl.ds(row0, tile), :]
        else:
            xw = xw_ref[...]
        # bf16 x bf16 -> f32 accumulation on the MXU, straight into the output
        o_ref[...] += jnp.dot(a_ref[...], xw,
                              preferred_element_type=jnp.float32)

    @pl.when(k == n_k - 1)
    def _():
        h = o_ref[...] * dsr_ref[...] + b_ref[...]   # D^-1/2 row scale + bias
        alpha = alpha_ref[0, 0]                      # shared PReLU slope (SMEM)
        o_ref[...] = jnp.where(h > 0, h, alpha * h).astype(o_ref.dtype)


# --------------------------------------------------------------------------
# Wrapper: graph preprocessing (glue) + the two pallas_calls
# --------------------------------------------------------------------------
@functools.partial(jax.jit, static_argnames=("max_tile",))
def encoder_dgi_forward(x, edge_index, w_t, bias, alpha, *, max_tile=1024):
    """x: [N,F] f32, edge_index: int32 [2,E] (row0=src, row1=dst),
    w_t: [F,H] f32 (spectral-normalized W^T), bias: [1,H] f32, alpha: [1,1] f32."""
    N, F_dim = x.shape
    H = w_t.shape[1]

    H_pad = _round_up(H, 128)
    F_pad = _round_up(F_dim, 128)
    tile, N_pad = _choose_tiling(N, max_tile)
    n_k = N_pad // tile                      # row tiles == reduction tiles

    # ---- Graph preprocessing (plain-JAX glue) -------------------------------
    # A_tilde = A + I, built directly padded & bf16 (binary -> exact in bf16).
    # TODO(synk): duplicate edges collapse to weight 1 here, whereas PyG's
    # scatter-add message passing counts them.
    src, dst = edge_index[0], edge_index[1]
    one = jnp.ones((), jnp.bfloat16)
    a_tilde = jnp.zeros((N_pad, N_pad), jnp.bfloat16)
    a_tilde = a_tilde.at[dst, src].set(one)            # messages flow src -> dst
    node_idx = jnp.arange(N)
    a_tilde = a_tilde.at[node_idx, node_idx].set(one)  # self-loops

    deg = jnp.sum(a_tilde, axis=1, dtype=jnp.float32)
    d_inv_sqrt = jnp.where(deg > 0, jax.lax.rsqrt(jnp.maximum(deg, 1.0)), 0.0)
    dsr = d_inv_sqrt.reshape(N_pad, 1)                 # output row scale (f32)

    # Block-sparsity metadata straight from edge_index (no extra pass over A):
    # per row tile, a compacted list of nonzero column-block indices + a count.
    bi = dst // tile
    bj = src // tile
    nzb = jnp.zeros((n_k, n_k), jnp.bool_).at[bi, bj].set(True)
    diag = jnp.arange(n_k)
    nzb = nzb.at[diag, diag].set(True)                 # self-loop blocks
    counts = jnp.sum(nzb, axis=1).astype(jnp.int32)
    order = jnp.argsort((~nzb).astype(jnp.int32), axis=1).astype(jnp.int32)
    last = jnp.take_along_axis(order, jnp.maximum(counts - 1, 0)[:, None], axis=1)
    kidx = jnp.arange(n_k, dtype=jnp.int32)
    # Padded slots repeat the last valid block index -> no re-DMA; pl.when skips.
    cid = jnp.where(kidx[None, :] < counts[:, None], order, last)
    cid_flat = cid.reshape(-1)

    # ---- Padded, bf16 MXU operands ------------------------------------------
    x_scaled = (x * d_inv_sqrt[:N, None]).astype(jnp.bfloat16)   # D^-1/2 X
    x_p = jnp.zeros((N_pad, F_pad), jnp.bfloat16).at[:N, :F_dim].set(x_scaled)
    wt_p = jnp.zeros((F_pad, H_pad), jnp.bfloat16).at[:F_dim, :H].set(
        w_t.astype(jnp.bfloat16))
    b_p = jnp.zeros((1, H_pad), jnp.float32).at[:, :H].set(bias)

    # ---- Stage 1: XW (row-tiled, computed once) ------------------------------
    vmem1 = 2 * tile * F_pad * 2 + 2 * F_pad * H_pad * 2 + 2 * tile * H_pad * 2
    xw = pl.pallas_call(
        _xw_kernel,
        out_shape=jax.ShapeDtypeStruct((N_pad, H_pad), jnp.bfloat16),
        grid_spec=pltpu.PrefetchScalarGridSpec(
            num_scalar_prefetch=0,
            grid=(n_k,),
            in_specs=[
                pl.BlockSpec((tile, F_pad), lambda i: (i, 0)),
                pl.BlockSpec((F_pad, H_pad), lambda i: (0, 0)),
            ],
            out_specs=pl.BlockSpec((tile, H_pad), lambda i: (i, 0)),
        ),
        compiler_params=pltpu.CompilerParams(
            dimension_semantics=("parallel",),
            vmem_limit_bytes=int(max(32 * 1024 * 1024, vmem1 * 3 // 2)),
        ),
    )(x_p, wt_p)

    # ---- Stage 2: block-sparse (A+I) @ XW + scale/bias/PReLU -----------------
    xw_bytes = N_pad * H_pad * 2
    xw_resident = xw_bytes <= 8 * 1024 * 1024   # one buffer <= 8 MiB fits all gens

    if xw_resident:
        xw_spec = pl.BlockSpec((N_pad, H_pad), lambda i, k, c, n: (0, 0))
        xw_buf_bytes = 2 * xw_bytes
    else:
        xw_spec = pl.BlockSpec((tile, H_pad),
                               lambda i, k, c, n: (c[i * n_k + k], 0))
        xw_buf_bytes = 2 * tile * H_pad * 2

    kernel = functools.partial(_aggregate_kernel, tile=tile, n_k=n_k,
                               xw_resident=xw_resident)

    vmem_need = (
        2 * tile * tile * 2          # A tiles, bf16, double-buffered
        + xw_buf_bytes               # XW (resident or streamed)
        + 2 * tile * H_pad * 4       # output tiles, f32, double-buffered
        + 2 * tile * 4               # d^-1/2 row-scale tiles
        + 2 * H_pad * 4              # bias
    )
    vmem_limit = int(max(32 * 1024 * 1024, (vmem_need * 3) // 2))

    out_p = pl.pallas_call(
        kernel,
        out_shape=jax.ShapeDtypeStruct((N_pad, H_pad), jnp.float32),
        grid_spec=pltpu.PrefetchScalarGridSpec(
            num_scalar_prefetch=2,                       # cid_flat, counts
            grid=(n_k, n_k),                             # (row tiles, reduction)
            in_specs=[
                pl.BlockSpec((tile, tile),
                             lambda i, k, c, n: (i, c[i * n_k + k])),   # A block
                xw_spec,                                                # XW
                pl.BlockSpec((tile, 1), lambda i, k, c, n: (i, 0)),     # D^-1/2
                pl.BlockSpec((1, H_pad), lambda i, k, c, n: (0, 0)),    # bias
                pl.BlockSpec(memory_space=pltpu.MemorySpace.SMEM),      # alpha
            ],
            out_specs=pl.BlockSpec((tile, H_pad), lambda i, k, c, n: (i, 0)),
        ),
        compiler_params=pltpu.CompilerParams(
            dimension_semantics=("parallel", "arbitrary"),
            vmem_limit_bytes=vmem_limit,
        ),
    )(cid_flat, counts, a_tilde, xw, dsr, b_p, alpha)

    return out_p[:N, :H]


# --------------------------------------------------------------------------
# Synthetic parameters matching Encoder_DGI.__init__ shapes
# --------------------------------------------------------------------------
def init_params(key, nfeat, nhid):
    k_w, _ = jax.random.split(key)
    limit = jnp.sqrt(6.0 / (nfeat + nhid))
    W = jax.random.uniform(k_w, (nhid, nfeat), jnp.float32, -limit, limit)
    # TODO(synk): torch's spectral_norm uses a single power-iteration estimate;
    # here the exact sigma_max is used (forward math otherwise identical).
    sigma = jnp.linalg.norm(W, ord=2)
    W_sn = W / sigma
    bias = jnp.zeros((1, nhid), jnp.float32)
    alpha = jnp.full((1, 1), 0.25, jnp.float32)         # nn.PReLU() default init
    return W_sn.T, bias, alpha                          # W^T : (nfeat, nhid)


if __name__ == "__main__":
    key = jax.random.PRNGKey(0)
    k_x, k_e, k_p = jax.random.split(key, 3)

    N, NFEAT, NHID, E = 16, 8, 32, 40

    # Node features and a random edge set (no self-loops; the glue adds them).
    x = jax.random.normal(k_x, (N, NFEAT), jnp.float32)
    src = jax.random.randint(k_e, (E,), 0, N, jnp.int32)
    dst = (src + 1 + jax.random.randint(jax.random.fold_in(k_e, 1), (E,), 0,
                                        N - 1, jnp.int32)) % N
    edge_index = jnp.stack([src, dst], axis=0)

    w_t, bias, alpha = init_params(k_p, NFEAT, NHID)

    out = encoder_dgi_forward(x, edge_index, w_t, bias, alpha)
    out = jax.block_until_ready(out)
    assert out.shape == (N, NHID)

    # ---- References ----------------------------------------------------------
    A = jnp.zeros((N, N), jnp.float32).at[dst, src].set(1.0)
    A = A.at[jnp.arange(N), jnp.arange(N)].set(1.0)
    deg = A.sum(axis=1)
    dis = jnp.where(deg > 0, 1.0 / jnp.sqrt(deg), 0.0)

    # Reference mirroring the kernel's bf16 quantization points.
    x_q = (x * dis[:, None]).astype(jnp.bfloat16).astype(jnp.float32)
    w_q = w_t.astype(jnp.bfloat16).astype(jnp.float32)
    xw_q = (x_q @ w_q).astype(jnp.bfloat16).astype(jnp.float32)
    ref_q = dis[:, None] * (A @ xw_q) + bias
    ref_q = jnp.where(ref_q > 0, ref_q, 0.25 * ref_q)
    assert jnp.allclose(out, ref_q, atol=2e-3, rtol=2e-3), float(
        jnp.max(jnp.abs(out - ref_q)))

    # Full f32 reference of the module math (loose tol: bf16 X / XW streams).
    a_hat = dis[:, None] * A * dis[None, :]
    ref = a_hat @ (x @ w_t) + bias
    ref = jnp.where(ref > 0, ref, 0.25 * ref)
    assert jnp.allclose(out, ref, atol=5e-2, rtol=5e-2), float(
        jnp.max(jnp.abs(out - ref)))

    print("KERNEL_OK")
</pallas_src>

<mosaic_0001>
module attributes {stable_mosaic.version = 11 : i64} {
  func.func @_xw_kernel(%arg0: i32, %arg1: memref<128x128xbf16, #tpu.memory_space<vmem>>, %arg2: memref<128x128xbf16, #tpu.memory_space<vmem>>, %arg3: memref<128x128xbf16, #tpu.memory_space<vmem>>) attributes {dimension_semantics = [#tpu.dimension_semantics<parallel>], iteration_bounds = array<i64: 1>, scalar_prefetch = 0 : i64, scratch_operands = 0 : i64, tpu.core_type = #tpu.core_type<tc>, window_params = [{transform_indices = @transform_0, window_bounds = array<i64: 128, 128>}, {pipeline_mode = #tpu.pipeline_mode<synchronous>, transform_indices = @transform_1, window_bounds = array<i64: 128, 128>}, {transform_indices = @transform_2, window_bounds = array<i64: 128, 128>}]} {
    %c0 = arith.constant 0 : index
    %c0_0 = arith.constant 0 : index
    %0 = vector.load %arg1[%c0, %c0_0] : memref<128x128xbf16, #tpu.memory_space<vmem>>, vector<128x128xbf16>
    %c0_1 = arith.constant 0 : index
    %c0_2 = arith.constant 0 : index
    %1 = vector.load %arg2[%c0_1, %c0_2] : memref<128x128xbf16, #tpu.memory_space<vmem>>, vector<128x128xbf16>
    %cst = arith.constant dense<0.000000e+00> : vector<128x128xf32>
    %2 = tpu.matmul %0, %1, %cst {dimension_numbers = #tpu.dot_dimension_numbers<[1], [0], [0], [1], [0, 0, 1, 1], [], []>} : vector<128x128xbf16>, vector<128x128xbf16>, vector<128x128xf32> -> vector<128x128xf32>
    %3 = arith.truncf %2 : vector<128x128xf32> to vector<128x128xbf16>
    %c0_3 = arith.constant 0 : index
    %c0_4 = arith.constant 0 : index
    %4 = vector.load %arg3[%c0_3, %c0_4] : memref<128x128xbf16, #tpu.memory_space<vmem>>, vector<128x128xbf16>
    tpu.vector_store %arg3[%c0_3, %c0_4], %3 {strides = array<i32>} : memref<128x128xbf16, #tpu.memory_space<vmem>>, vector<128x128xbf16>,
    return
  }
  func.func @transform_0(%arg0: i32) -> (i32, i32) {
    %c0_i32 = arith.constant 0 : i32
    %c0_i32_0 = arith.constant 0 : i32
    return %arg0, %c0_i32 : i32, i32
  }
  func.func @transform_1(%arg0: i32) -> (i32, i32) {
    %c0_i32 = arith.constant 0 : i32
    %c0_i32_0 = arith.constant 0 : i32
    %c0_i32_1 = arith.constant 0 : i32
    return %c0_i32, %c0_i32_0 : i32, i32
  }
  func.func @transform_2(%arg0: i32) -> (i32, i32) {
    %c0_i32 = arith.constant 0 : i32
    %c0_i32_0 = arith.constant 0 : i32
    return %arg0, %c0_i32 : i32, i32
  }
}

module attributes {stable_mosaic.version = 11 : i64} {
  func.func @_aggregate_kernel(%arg0: i32, %arg1: i32, %arg2: memref<1xi32, #tpu.memory_space<smem>>, %arg3: memref<1xi32, #tpu.memory_space<smem>>, %arg4: memref<128x128xbf16, #tpu.memory_space<vmem>>, %arg5: memref<128x128xbf16, #tpu.memory_space<vmem>>, %arg6: memref<128x1xf32, #tpu.memory_space<vmem>>, %arg7: memref<1x128xf32, #tpu.memory_space<vmem>>, %arg8: memref<1x1xf32, #tpu.memory_space<smem>>, %arg9: memref<128x128xf32, #tpu.memory_space<vmem>>) attributes {dimension_semantics = [#tpu.dimension_semantics<parallel>, #tpu.dimension_semantics<arbitrary>], iteration_bounds = array<i64: 1, 1>, scalar_prefetch = 2 : i64, scratch_operands = 0 : i64, tpu.core_type = #tpu.core_type<tc>, window_params = [{transform_indices = @transform_0, window_bounds = array<i64: 128, 128>}, {pipeline_mode = #tpu.pipeline_mode<synchronous>, transform_indices = @transform_1, window_bounds = array<i64: 128, 128>}, {transform_indices = @transform_2, window_bounds = array<i64: 128, 1>}, {pipeline_mode = #tpu.pipeline_mode<synchronous>, transform_indices = @transform_3, window_bounds = array<i64: 1, 128>}, {transform_indices = @transform_4, window_bounds = array<i64: 1, 1>}, {transform_indices = @transform_5, window_bounds = array<i64: 128, 128>}]} {
    %c0_i32 = arith.constant 0 : i32
    %0 = arith.cmpi eq, %arg1, %c0_i32 : i32
    %1 = arith.extui %0 : i1 to i32
    %c0_i32_0 = arith.constant 0 : i32
    %2 = arith.cmpi ne, %1, %c0_i32_0 : i32
    scf.if %2 {
      %cst = arith.constant 0.000000e+00 : f32
      %11 = vector.broadcast %cst : f32 to vector<128x128xf32>
      %c0 = arith.constant 0 : index
      %c0_4 = arith.constant 0 : index
      %12 = vector.load %arg9[%c0, %c0_4] : memref<128x128xf32, #tpu.memory_space<vmem>>, vector<128x128xf32>
      tpu.vector_store %arg9[%c0, %c0_4], %11 {strides = array<i32>} : memref<128x128xf32, #tpu.memory_space<vmem>>, vector<128x128xf32>,
    } else {
    }
    %3 = arith.index_cast %arg0 : i32 to index
    %4 = memref.load %arg3[%3] : memref<1xi32, #tpu.memory_space<smem>>
    %5 = arith.cmpi slt, %arg1, %4 : i32
    %6 = arith.extui %5 : i1 to i32
    %c0_i32_1 = arith.constant 0 : i32
    %7 = arith.cmpi ne, %6, %c0_i32_1 : i32
    scf.if %7 {
      %c1_i32 = arith.constant 1 : i32
      %11 = arith.muli %arg0, %c1_i32 : i32
      %12 = arith.addi %11, %arg1 : i32
      %13 = arith.index_cast %12 : i32 to index
      %14 = memref.load %arg2[%13] : memref<1xi32, #tpu.memory_space<smem>>
      %c128_i32 = arith.constant 128 : i32
      %15 = arith.muli %14, %c128_i32 : i32
      %16 = tpu.assume_multiple %15, 128 : i32
      %17 = arith.index_cast %16 : i32 to index
      %c0 = arith.constant 0 : index
      %18 = vector.load %arg5[%17, %c0] : memref<128x128xbf16, #tpu.memory_space<vmem>>, vector<128x128xbf16>
      %c0_4 = arith.constant 0 : index
      %c0_5 = arith.constant 0 : index
      %19 = vector.load %arg9[%c0_4, %c0_5] : memref<128x128xf32, #tpu.memory_space<vmem>>, vector<128x128xf32>
      %c0_6 = arith.constant 0 : index
      %c0_7 = arith.constant 0 : index
      %20 = vector.load %arg4[%c0_6, %c0_7] : memref<128x128xbf16, #tpu.memory_space<vmem>>, vector<128x128xbf16>
      %cst = arith.constant dense<0.000000e+00> : vector<128x128xf32>
      %21 = tpu.matmul %20, %18, %cst {dimension_numbers = #tpu.dot_dimension_numbers<[1], [0], [0], [1], [0, 0, 1, 1], [], []>} : vector<128x128xbf16>, vector<128x128xbf16>, vector<128x128xf32> -> vector<128x128xf32>
      %22 = arith.addf %19, %21 : vector<128x128xf32>
      %c0_8 = arith.constant 0 : index
      %c0_9 = arith.constant 0 : index
      %23 = vector.load %arg9[%c0_8, %c0_9] : memref<128x128xf32, #tpu.memory_space<vmem>>, vector<128x128xf32>
      tpu.vector_store %arg9[%c0_8, %c0_9], %22 {strides = array<i32>} : memref<128x128xf32, #tpu.memory_space<vmem>>, vector<128x128xf32>,
    } else {
    }
    %c0_i32_2 = arith.constant 0 : i32
    %8 = arith.cmpi eq, %arg1, %c0_i32_2 : i32
    %9 = arith.extui %8 : i1 to i32
    %c0_i32_3 = arith.constant 0 : i32
    %10 = arith.cmpi ne, %9, %c0_i32_3 : i32
    scf.if %10 {
      %c0 = arith.constant 0 : index
      %c0_4 = arith.constant 0 : index
      %11 = vector.load %arg9[%c0, %c0_4] : memref<128x128xf32, #tpu.memory_space<vmem>>, vector<128x128xf32>
      %c0_5 = arith.constant 0 : index
      %c0_6 = arith.constant 0 : index
      %12 = vector.load %arg6[%c0_5, %c0_6] : memref<128x1xf32, #tpu.memory_space<vmem>>, vector<128x1xf32>
      %13 = vector.broadcast %12 : vector<128x1xf32> to vector<128x128xf32>
      %14 = arith.mulf %11, %13 : vector<128x128xf32>
      %c0_7 = arith.constant 0 : index
      %c0_8 = arith.constant 0 : index
      %15 = vector.load %arg7[%c0_7, %c0_8] : memref<1x128xf32, #tpu.memory_space<vmem>>, vector<1x128xf32>
      %16 = vector.broadcast %15 : vector<1x128xf32> to vector<128x128xf32>
      %17 = arith.addf %14, %16 : vector<128x128xf32>
      %c0_9 = arith.constant 0 : index
      %c0_10 = arith.constant 0 : index
      %18 = memref.load %arg8[%c0_9, %c0_10] : memref<1x1xf32, #tpu.memory_space<smem>>
      %cst = arith.constant 0.000000e+00 : f32
      %19 = vector.broadcast %cst : f32 to vector<128x128xf32>
      %20 = arith.cmpf ogt, %17, %19 : vector<128x128xf32>
      %21 = vector.broadcast %18 : f32 to vector<128x128xf32>
      %22 = arith.mulf %21, %17 : vector<128x128xf32>
      %23 = arith.select %20, %17, %22 : vector<128x128xi1>, vector<128x128xf32>
      %c0_11 = arith.constant 0 : index
      %c0_12 = arith.constant 0 : index
      %24 = vector.load %arg9[%c0_11, %c0_12] : memref<128x128xf32, #tpu.memory_space<vmem>>, vector<128x128xf32>
      tpu.vector_store %arg9[%c0_11, %c0_12], %23 {strides = array<i32>} : memref<128x128xf32, #tpu.memory_space<vmem>>, vector<128x128xf32>,
    } else {
    }
    return
  }
  func.func @transform_0(%arg0: i32, %arg1: i32, %arg2: memref<1xi32, #tpu.memory_space<smem>>, %arg3: memref<1xi32, #tpu.memory_space<smem>>) -> (i32, i32) {
    %c1_i32 = arith.constant 1 : i32
    %0 = arith.muli %arg0, %c1_i32 : i32
    %1 = arith.addi %0, %arg1 : i32
    %2 = arith.index_cast %1 : i32 to index
    %3 = memref.load %arg2[%2] : memref<1xi32, #tpu.memory_space<smem>>
    %c0_i32 = arith.constant 0 : i32
    return %arg0, %3 : i32, i32
  }
  func.func @transform_1(%arg0: i32, %arg1: i32, %arg2: memref<1xi32, #tpu.memory_space<smem>>, %arg3: memref<1xi32, #tpu.memory_space<smem>>) -> (i32, i32) {
    %c0_i32 = arith.constant 0 : i32
    %c0_i32_0 = arith.constant 0 : i32
    %c0_i32_1 = arith.constant 0 : i32
    return %c0_i32, %c0_i32_0 : i32, i32
  }
  func.func @transform_2(%arg0: i32, %arg1: i32, %arg2: memref<1xi32, #tpu.memory_space<smem>>, %arg3: memref<1xi32, #tpu.memory_space<smem>>) -> (i32, i32) {
    %c0_i32 = arith.constant 0 : i32
    %c0_i32_0 = arith.constant 0 : i32
    return %arg0, %c0_i32 : i32, i32
  }
  func.func @transform_3(%arg0: i32, %arg1: i32, %arg2: memref<1xi32, #tpu.memory_space<smem>>, %arg3: memref<1xi32, #tpu.memory_space<smem>>) -> (i32, i32) {
    %c0_i32 = arith.constant 0 : i32
    %c0_i32_0 = arith.constant 0 : i32
    %c0_i32_1 = arith.constant 0 : i32
    return %c0_i32, %c0_i32_0 : i32, i32
  }
  func.func @transform_4(%arg0: i32, %arg1: i32, %arg2: memref<1xi32, #tpu.memory_space<smem>>, %arg3: memref<1xi32, #tpu.memory_space<smem>>) -> (i32, i32) {
    %c0_i32 = arith.constant 0 : i32
    %c0_i32_0 = arith.constant 0 : i32
    %c0_i32_1 = arith.constant 0 : i32
    return %c0_i32, %c0_i32_0 : i32, i32
  }
  func.func @transform_5(%arg0: i32, %arg1: i32, %arg2: memref<1xi32, #tpu.memory_space<smem>>, %arg3: memref<1xi32, #tpu.memory_space<smem>>) -> (i32, i32) {
    %c0_i32 = arith.constant 0 : i32
    %c0_i32_0 = arith.constant 0 : i32
    return %arg0, %c0_i32 : i32, i32
  }
}

</mosaic_0001>

<llo_original>
// kernel: encoder_dgi_forward.3
$region0: #{encoder_dgi_forward.3}
  #allocation0 [shape = 'u32[]', space=smem, size = 0x4, offset = 0x4, fixed_abs, tag = 'smem constant byte address 0x4 - core index']
  #allocation1 [shape = 'u32[72,128]{1,0:T(1,128)}', space=vmem, size = 0x9000, scoped, tag = 'internal scratch']
  #allocation2 [shape = 's32[1]{0}', space=sflag, size = 0x4, scoped, tag = 'scoped memory for encoder_dgi_forward.3']
  #allocation3 [shape = 's32[1]{0:T(128)S(6)}', space=smem, size = 0x200, scoped, tag = 'prefetched SMEM operand 0']
  #allocation4 [shape = 's32[1]{0:T(128)S(6)}', space=smem, size = 0x200, scoped, tag = 'prefetched SMEM operand 1']
  #allocation5 [shape = 'f32[1,1]{1,0:T(1,128)S(6)}', space=smem, size = 0x200, scoped, tag = 'scoped memory for encoder_dgi_forward.3']
  %s0 = inlined_call_operand.<no memory space> [shape: s32[1], index: 0, kind: input, shape index: {}]
  %s1 = inlined_call_operand.<no memory space> [shape: s32[1], index: 1, kind: input, shape index: {}]
  %s2 = inlined_call_operand.vmem [shape: bf16[128,128], index: 2, kind: input, shape index: {}]
  %s3 = inlined_call_operand.vmem [shape: bf16[128,128], index: 3, kind: input, shape index: {}]
  %s4 = inlined_call_operand.vmem [shape: f32[128,1], index: 4, kind: input, shape index: {}]
  %s5 = inlined_call_operand.vmem [shape: f32[1,128], index: 5, kind: input, shape index: {}]
  %s6 = inlined_call_operand.<no memory space> [shape: f32[1,1], index: 6, kind: input, shape index: {}]
  %s7 = inlined_call_operand.vmem [shape: f32[128,128], index: 7, kind: output, shape index: {}]
  %s8 = sld [smem:[#allocation0]]
  $region42: #{encoder_dgi_forward.3} parent=0
    _
  %s10 = ssub.s32 1, %s8
  %s11 = scalar_select 0, %s10, %s8
  %12 = sst [smem:[#allocation3]] %s0
  %13 = sst [smem:[#allocation4]] %s1
  %14 = sst [smem:[#allocation5]] %s6
  // Predicated region
  $region2: #{encoder_dgi_forward.3} parent=0 // pred_check
    _
  $region3: #{encoder_dgi_forward.3} parent=0 // pred_check_branch
    %16 = sbr.rel (0) target = $region5
  $region4: #{encoder_dgi_forward.3} parent=0 // pred_region
    %s17 = sadd.s32 0, 0
    %s18 = sld [smem:[#allocation3 + %s17]]
    %p19 = scmp.lt.s32.totalorder %s18, 0
    %s20 = scalar_select %p19, %s18, 0
    %s21 = smul.addr %s20, 4
    %s22 = scalar_lea.vmem %s2, %s21
    %s23 = sadd.s32 0, 0
    %s24 = sld [smem:[#allocation3 + %s23]]
  $region5: #{encoder_dgi_forward.3} parent=0 // pred_fallthru
    _
  // Predicated region
  $region6: #{encoder_dgi_forward.3} parent=0 // pred_check
    _
  $region7: #{encoder_dgi_forward.3} parent=0 // pred_check_branch
    %26 = sbr.rel (0) target = $region9
  $region8: #{encoder_dgi_forward.3} parent=0 // pred_region
    _
  $region9: #{encoder_dgi_forward.3} parent=0 // pred_fallthru
    _
  // Predicated region
  $region10: #{encoder_dgi_forward.3} parent=0 // pred_check
    _
  $region11: #{encoder_dgi_forward.3} parent=0 // pred_check_branch
    %28 = sbr.rel (0) target = $region13
  $region12: #{encoder_dgi_forward.3} parent=0 // pred_region
    _
  $region13: #{encoder_dgi_forward.3} parent=0 // pred_fallthru
    _
  // Predicated region
  $region14: #{encoder_dgi_forward.3} parent=0 // pred_check
    _
  $region15: #{encoder_dgi_forward.3} parent=0 // pred_check_branch
    %30 = sbr.rel (0) target = $region17
  $region16: #{encoder_dgi_forward.3} parent=0 // pred_region
    _
  $region17: #{encoder_dgi_forward.3} parent=0 // pred_fallthru
    _
  // Predicated region
  $region18: #{encoder_dgi_forward.3} parent=0 // pred_check
    _
  $region19: #{encoder_dgi_forward.3} parent=0 // pred_check_branch
    %32 = sbr.rel (0) target = $region21
  $region20: #{encoder_dgi_forward.3} parent=0 // pred_region
    _
  $region21: #{encoder_dgi_forward.3} parent=0 // pred_fallthru
    _
  %s33 = sadd.s32 0, 0
  %s34 = sld [smem:[#allocation3 + %s33]]
  %p35 = scmp.lt.s32.totalorder %s34, 0
  %s36 = scalar_select %p35, %s34, 0
  %s37 = smul.addr %s36, 4
  %s38 = scalar_lea.vmem %s2, %s37
  %s39 = sadd.s32 0, 0
  %s40 = sld [smem:[#allocation3 + %s39]]
  %p41 = scmp.lt.s32.totalorder %s40, 0
  %s42 = scalar_select %p41, %s40, 0
  %s43 = smul.addr %s42, 4
  %s44 = scalar_lea.vmem %s2, %s43
  %s45 = sadd.s32 0, 0
  %s46 = sld [smem:[#allocation3 + %s45]]
  %p47 = scmp.eq.s32.totalorder 0, 0
  // Predicated region
  $region22: #{encoder_dgi_forward.3} parent=0 // pred_check
    %p48 = pneg %p47
  $region23: #{encoder_dgi_forward.3} parent=0 // pred_check_branch
    %50 = sbr.rel (%p48) target = $region25
  $region24: #{encoder_dgi_forward.3} parent=0 // pred_region
    %51 = vst [vmem:[%s7] sm:$0xff] 0.0
    %52 = vst [vmem:[%s7 + $0x8] sm:$0xff] 0.0
    %53 = vst [vmem:[%s7 + $0x10] sm:$0xff] 0.0
    %54 = vst [vmem:[%s7 + $0x18] sm:$0xff] 0.0
    %55 = vst [vmem:[%s7 + $0x20] sm:$0xff] 0.0
    %56 = vst [vmem:[%s7 + $0x28] sm:$0xff] 0.0
    %57 = vst [vmem:[%s7 + $0x30] sm:$0xff] 0.0
    %58 = vst [vmem:[%s7 + $0x38] sm:$0xff] 0.0
    %59 = vst [vmem:[%s7 + $0x40] sm:$0xff] 0.0
    %60 = vst [vmem:[%s7 + $0x48] sm:$0xff] 0.0
    %61 = vst [vmem:[%s7 + $0x50] sm:$0xff] 0.0
    %62 = vst [vmem:[%s7 + $0x58] sm:$0xff] 0.0
    %63 = vst [vmem:[%s7 + $0x60] sm:$0xff] 0.0
    %64 = vst [vmem:[%s7 + $0x68] sm:$0xff] 0.0
    %65 = vst [vmem:[%s7 + $0x70] sm:$0xff] 0.0
    %66 = vst [vmem:[%s7 + $0x78] sm:$0xff] 0.0
  $region25: #{encoder_dgi_forward.3} parent=0 // pred_fallthru
    _
  %s67 = sld [smem:[#allocation4]]
  %p68 = scmp.lt.s32.totalorder 0, %s67
  // Predicated region
  $region26: #{encoder_dgi_forward.3} parent=0 // pred_check
    %p69 = pneg %p68
  $region27: #{encoder_dgi_forward.3} parent=0 // pred_check_branch
    %71 = sbr.rel (%p69) target = $region29
  $region28: #{encoder_dgi_forward.3} parent=0 // pred_region
    %s72 = sadd.s32 0, 0
    %s73 = sld [smem:[#allocation3 + %s72]]
    %s74 = smul.u32 %s73, 128
    %s75 = sshra.s32 %s74, 3
    %s76 = sand.u32 %s74, 7
    %s77 = smul.addr %s75, 4
    %s78 = scalar_lea.vmem %s3, %s77
    %v79 = vld [vmem:[%s78] sm:$0xf]
    %v80 = vld [vmem:[%s78 + $0x4] sm:$0xf]
    %v81 = vld [vmem:[%s78 + $0x8] sm:$0xf]
    %v82 = vld [vmem:[%s78 + $0xc] sm:$0xf]
    %v83 = vld [vmem:[%s78 + $0x10] sm:$0xf]
    %v84 = vld [vmem:[%s78 + $0x14] sm:$0xf]
    %v85 = vld [vmem:[%s78 + $0x18] sm:$0xf]
    %v86 = vld [vmem:[%s78 + $0x1c] sm:$0xf]
    %v87 = vld [vmem:[%s78 + $0x20] sm:$0xf]
    %v88 = vld [vmem:[%s78 + $0x24] sm:$0xf]
    %v89 = vld [vmem:[%s78 + $0x28] sm:$0xf]
    %v90 = vld [vmem:[%s78 + $0x2c] sm:$0xf]
    %v91 = vld [vmem:[%s78 + $0x30] sm:$0xf]
    %v92 = vld [vmem:[%s78 + $0x34] sm:$0xf]
    %v93 = vld [vmem:[%s78 + $0x38] sm:$0xf]
    %v94 = vld [vmem:[%s78 + $0x3c] sm:$0xf]
    %v95 = vld [vmem:[%s7] sm:$0xff]
    %v96 = vld [vmem:[%s7 + $0x8] sm:$0xff]
    %v97 = vld [vmem:[%s7 + $0x10] sm:$0xff]
    %v98 = vld [vmem:[%s7 + $0x18] sm:$0xff]
    %v99 = vld [vmem:[%s7 + $0x20] sm:$0xff]
    %v100 = vld [vmem:[%s7 + $0x28] sm:$0xff]
    %v101 = vld [vmem:[%s7 + $0x30] sm:$0xff]
    %v102 = vld [vmem:[%s7 + $0x38] sm:$0xff]
    %v103 = vld [vmem:[%s7 + $0x40] sm:$0xff]
    %v104 = vld [vmem:[%s7 + $0x48] sm:$0xff]
    %v105 = vld [vmem:[%s7 + $0x50] sm:$0xff]
    %v106 = vld [vmem:[%s7 + $0x58] sm:$0xff]
    %v107 = vld [vmem:[%s7 + $0x60] sm:$0xff]
    %v108 = vld [vmem:[%s7 + $0x68] sm:$0xff]
    %v109 = vld [vmem:[%s7 + $0x70] sm:$0xff]
    %v110 = vld [vmem:[%s7 + $0x78] sm:$0xff]
    %v111 = vld [vmem:[%s44] sm:$0xf]
    %v112 = vld [vmem:[%s44 + $0x4] sm:$0xf]
    %v113 = vld [vmem:[%s44 + $0x8] sm:$0xf]
    %v114 = vld [vmem:[%s44 + $0xc] sm:$0xf]
    %v115 = vld [vmem:[%s44 + $0x10] sm:$0xf]
    %v116 = vld [vmem:[%s44 + $0x14] sm:$0xf]
    %v117 = vld [vmem:[%s44 + $0x18] sm:$0xf]
    %v118 = vld [vmem:[%s44 + $0x1c] sm:$0xf]
    %v119 = vld [vmem:[%s44 + $0x20] sm:$0xf]
    %v120 = vld [vmem:[%s44 + $0x24] sm:$0xf]
    %v121 = vld [vmem:[%s44 + $0x28] sm:$0xf]
    %v122 = vld [vmem:[%s44 + $0x2c] sm:$0xf]
    %v123 = vld [vmem:[%s44 + $0x30] sm:$0xf]
    %v124 = vld [vmem:[%s44 + $0x34] sm:$0xf]
    %v125 = vld [vmem:[%s44 + $0x38] sm:$0xf]
    %v126 = vld [vmem:[%s44 + $0x3c] sm:$0xf]
    %v143 = vunpack.c.l.b16 %v111
    %v144 = vunpack.c.l.b16 %v112
    %v145 = vunpack.c.l.b16 %v113
    %v146 = vunpack.c.l.b16 %v114
    %v147 = vunpack.c.l.b16 %v115
    %v148 = vunpack.c.l.b16 %v116
    %v149 = vunpack.c.l.b16 %v117
    %v150 = vunpack.c.l.b16 %v118
    %v151 = vunpack.c.l.b16 %v119
    %v152 = vunpack.c.l.b16 %v120
    %v153 = vunpack.c.l.b16 %v121
    %v154 = vunpack.c.l.b16 %v122
    %v155 = vunpack.c.l.b16 %v123
    %v156 = vunpack.c.l.b16 %v124
    %v157 = vunpack.c.l.b16 %v125
    %v158 = vunpack.c.l.b16 %v126
    %v159 = vpack.c.b16 %v144, %v143
    %v160 = vpack.c.b16 %v146, %v145
    %v161 = vpack.c.b16 %v148, %v147
    %v162 = vpack.c.b16 %v150, %v149
    %v163 = vpack.c.b16 %v152, %v151
    %v164 = vpack.c.b16 %v154, %v153
    %v165 = vpack.c.b16 %v156, %v155
    %v166 = vpack.c.b16 %v158, %v157
    %v191 = vunpack.c.l.b16 %v79
    %v192 = vunpack.c.l.b16 %v80
    %v193 = vunpack.c.l.b16 %v81
    %v194 = vunpack.c.l.b16 %v82
    %v195 = vunpack.c.l.b16 %v83
    %v196 = vunpack.c.l.b16 %v84
    %v197 = vunpack.c.l.b16 %v85
    %v198 = vunpack.c.l.b16 %v86
    %v199 = vunpack.c.l.b16 %v87
    %v200 = vunpack.c.l.b16 %v88
    %v201 = vunpack.c.l.b16 %v89
    %v202 = vunpack.c.l.b16 %v90
    %v203 = vunpack.c.l.b16 %v91
    %v204 = vunpack.c.l.b16 %v92
    %v205 = vunpack.c.l.b16 %v93
    %v206 = vunpack.c.l.b16 %v94
    %v207 = vpack.c.b16 %v192, %v191
    %v208 = vpack.c.b16 %v194, %v193
    %v209 = vpack.c.b16 %v196, %v195
    %v210 = vpack.c.b16 %v198, %v197
    %v211 = vpack.c.b16 %v200, %v199
    %v212 = vpack.c.b16 %v202, %v201
    %v213 = vpack.c.b16 %v204, %v203
    %v214 = vpack.c.b16 %v206, %v205
    %223 = vmatpush.bf16.msra.mxu0 %v214
    %224 = vmatpush.bf16.msra.mxu0 %v213
    %225 = vmatpush.bf16.msra.mxu0 %v212
    %226 = vmatpush.bf16.msra.mxu0 %v211
    %227 = vmatpush.bf16.msra.mxu0 %v210
    %228 = vmatpush.bf16.msra.mxu0 %v209
    %229 = vmatpush.bf16.msra.mxu0 %v208
    %230 = vmatpush.bf16.msra.mxu0 %v207
    %231 = vmatmul.bf16.gmra.mxu0 %v159
    %v232 = vpop.f32.mrf.mxu0
    %v233 = vadd.f32 0.0, %v232
    %v234 = vpop.f32.mrf.mxu0
    %v235 = vadd.f32 0.0, %v234
    %236 = vmatmul.bf16.gmra.mxu0 %v160
    %v237 = vpop.f32.mrf.mxu0
    %v238 = vadd.f32 0.0, %v237
    %v239 = vpop.f32.mrf.mxu0
    %v240 = vadd.f32 0.0, %v239
    %241 = vmatmul.bf16.gmra.mxu0 %v161
    %v242 = vpop.f32.mrf.mxu0
    %v243 = vadd.f32 0.0, %v242
    %v244 = vpop.f32.mrf.mxu0
    %v245 = vadd.f32 0.0, %v244
    %246 = vmatmul.bf16.gmra.mxu0 %v162
    %v247 = vpop.f32.mrf.mxu0
    %v248 = vadd.f32 0.0, %v247
    %v249 = vpop.f32.mrf.mxu0
    %v250 = vadd.f32 0.0, %v249
    %251 = vmatmul.bf16.gmra.mxu0 %v163
    %v252 = vpop.f32.mrf.mxu0
    %v253 = vadd.f32 0.0, %v252
    %v254 = vpop.f32.mrf.mxu0
    %v255 = vadd.f32 0.0, %v254
    %256 = vmatmul.bf16.gmra.mxu0 %v164
    %v257 = vpop.f32.mrf.mxu0
    %v258 = vadd.f32 0.0, %v257
    %v259 = vpop.f32.mrf.mxu0
    %v260 = vadd.f32 0.0, %v259
    %261 = vmatmul.bf16.gmra.mxu0 %v165
    %v262 = vpop.f32.mrf.mxu0
    %v263 = vadd.f32 0.0, %v262
    %v264 = vpop.f32.mrf.mxu0
    %v265 = vadd.f32 0.0, %v264
    %266 = vmatmul.bf16.gmra.mxu0 %v166
    %v267 = vpop.f32.mrf.mxu0
    %v268 = vadd.f32 0.0, %v267
    %v269 = vpop.f32.mrf.mxu0
    %v270 = vadd.f32 0.0, %v269
    %271 = vdwg.mxu0
    %v272 = vadd.f32 %v95, %v233
    %v273 = vadd.f32 %v96, %v235
    %v274 = vadd.f32 %v97, %v238
    %v275 = vadd.f32 %v98, %v240
    %v276 = vadd.f32 %v99, %v243
    %v277 = vadd.f32 %v100, %v245
    %v278 = vadd.f32 %v101, %v248
    %v279 = vadd.f32 %v102, %v250
    %v280 = vadd.f32 %v103, %v253
    %v281 = vadd.f32 %v104, %v255
    %v282 = vadd.f32 %v105, %v258
    %v283 = vadd.f32 %v106, %v260
    %v284 = vadd.f32 %v107, %v263
    %v285 = vadd.f32 %v108, %v265
    %v286 = vadd.f32 %v109, %v268
    %v287 = vadd.f32 %v110, %v270
    %288 = vst [vmem:[%s7] sm:$0xff] %v272
    %289 = vst [vmem:[%s7 + $0x8] sm:$0xff] %v273
    %290 = vst [vmem:[%s7 + $0x10] sm:$0xff] %v274
    %291 = vst [vmem:[%s7 + $0x18] sm:$0xff] %v275
    %292 = vst [vmem:[%s7 + $0x20] sm:$0xff] %v276
    %293 = vst [vmem:[%s7 + $0x28] sm:$0xff] %v277
    %294 = vst [vmem:[%s7 + $0x30] sm:$0xff] %v278
    %295 = vst [vmem:[%s7 + $0x38] sm:$0xff] %v279
    %296 = vst [vmem:[%s7 + $0x40] sm:$0xff] %v280
    %297 = vst [vmem:[%s7 + $0x48] sm:$0xff] %v281
    %298 = vst [vmem:[%s7 + $0x50] sm:$0xff] %v282
    %299 = vst [vmem:[%s7 + $0x58] sm:$0xff] %v283
    %300 = vst [vmem:[%s7 + $0x60] sm:$0xff] %v284
    %301 = vst [vmem:[%s7 + $0x68] sm:$0xff] %v285
    %302 = vst [vmem:[%s7 + $0x70] sm:$0xff] %v286
    %303 = vst [vmem:[%s7 + $0x78] sm:$0xff] %v287
  $region29: #{encoder_dgi_forward.3} parent=0 // pred_fallthru
    _
  // Predicated region
  $region30: #{encoder_dgi_forward.3} parent=0 // pred_check
    %p304 = pneg %p47
  $region31: #{encoder_dgi_forward.3} parent=0 // pred_check_branch
    %306 = sbr.rel (%p304) target = $region33
  $region32: #{encoder_dgi_forward.3} parent=0 // pred_region
    %v307 = vld [vmem:[%s7] sm:$0xff]
    %v308 = vld [vmem:[%s7 + $0x8] sm:$0xff]
    %v309 = vld [vmem:[%s7 + $0x10] sm:$0xff]
    %v310 = vld [vmem:[%s7 + $0x18] sm:$0xff]
    %v311 = vld [vmem:[%s7 + $0x20] sm:$0xff]
    %v312 = vld [vmem:[%s7 + $0x28] sm:$0xff]
    %v313 = vld [vmem:[%s7 + $0x30] sm:$0xff]
    %v314 = vld [vmem:[%s7 + $0x38] sm:$0xff]
    %v315 = vld [vmem:[%s7 + $0x40] sm:$0xff]
    %v316 = vld [vmem:[%s7 + $0x48] sm:$0xff]
    %v317 = vld [vmem:[%s7 + $0x50] sm:$0xff]
    %v318 = vld [vmem:[%s7 + $0x58] sm:$0xff]
    %v319 = vld [vmem:[%s7 + $0x60] sm:$0xff]
    %v320 = vld [vmem:[%s7 + $0x68] sm:$0xff]
    %v321 = vld [vmem:[%s7 + $0x70] sm:$0xff]
    %v322 = vld [vmem:[%s7 + $0x78] sm:$0xff]
    %v323 = vld [vmem:[%s4] sm:$0xff]
    %v324 = vld [vmem:[%s4 + $0x8] sm:$0xff]
    %v325 = vld [vmem:[%s4 + $0x10] sm:$0xff]
    %v326 = vld [vmem:[%s4 + $0x18] sm:$0xff]
    %v327 = vld [vmem:[%s4 + $0x20] sm:$0xff]
    %v328 = vld [vmem:[%s4 + $0x28] sm:$0xff]
    %v329 = vld [vmem:[%s4 + $0x30] sm:$0xff]
    %v330 = vld [vmem:[%s4 + $0x38] sm:$0xff]
    %v331 = vld [vmem:[%s4 + $0x40] sm:$0xff]
    %v332 = vld [vmem:[%s4 + $0x48] sm:$0xff]
    %v333 = vld [vmem:[%s4 + $0x50] sm:$0xff]
    %v334 = vld [vmem:[%s4 + $0x58] sm:$0xff]
    %v335 = vld [vmem:[%s4 + $0x60] sm:$0xff]
    %v336 = vld [vmem:[%s4 + $0x68] sm:$0xff]
    %v337 = vld [vmem:[%s4 + $0x70] sm:$0xff]
    %v338 = vld [vmem:[%s4 + $0x78] sm:$0xff]
    %340 = vset.pattern.permute.xlu0 0
    %341 = vperm.xlu0 %340, %v323
    %v342 = vpop.permute.xlu0 %341
    %345 = vset.pattern.permute.xlu0 0
    %346 = vperm.xlu0 %345, %v324
    %v347 = vpop.permute.xlu0 %346
    %350 = vset.pattern.permute.xlu0 0
    %351 = vperm.xlu0 %350, %v325
    %v352 = vpop.permute.xlu0 %351
    %355 = vset.pattern.permute.xlu0 0
    %356 = vperm.xlu0 %355, %v326
    %v357 = vpop.permute.xlu0 %356
    %360 = vset.pattern.permute.xlu0 0
    %361 = vperm.xlu0 %360, %v327
    %v362 = vpop.permute.xlu0 %361
    %365 = vset.pattern.permute.xlu0 0
    %366 = vperm.xlu0 %365, %v328
    %v367 = vpop.permute.xlu0 %366
    %370 = vset.pattern.permute.xlu0 0
    %371 = vperm.xlu0 %370, %v329
    %v372 = vpop.permute.xlu0 %371
    %375 = vset.pattern.permute.xlu0 0
    %376 = vperm.xlu0 %375, %v330
    %v377 = vpop.permute.xlu0 %376
    %380 = vset.pattern.permute.xlu0 0
    %381 = vperm.xlu0 %380, %v331
    %v382 = vpop.permute.xlu0 %381
    %385 = vset.pattern.permute.xlu0 0
    %386 = vperm.xlu0 %385, %v332
    %v387 = vpop.permute.xlu0 %386
    %390 = vset.pattern.permute.xlu0 0
    %391 = vperm.xlu0 %390, %v333
    %v392 = vpop.permute.xlu0 %391
    %395 = vset.pattern.permute.xlu0 0
    %396 = vperm.xlu0 %395, %v334
    %v397 = vpop.permute.xlu0 %396
    %400 = vset.pattern.permute.xlu0 0
    %401 = vperm.xlu0 %400, %v335
    %v402 = vpop.permute.xlu0 %401
    %405 = vset.pattern.permute.xlu0 0
    %406 = vperm.xlu0 %405, %v336
    %v407 = vpop.permute.xlu0 %406
    %410 = vset.pattern.permute.xlu0 0
    %411 = vperm.xlu0 %410, %v337
    %v412 = vpop.permute.xlu0 %411
    %415 = vset.pattern.permute.xlu0 0
    %416 = vperm.xlu0 %415, %v338
    %v417 = vpop.permute.xlu0 %416
    %v419 = vmul.f32 %v307, %v342
    %v420 = vmul.f32 %v308, %v347
    %v421 = vmul.f32 %v309, %v352
    %v422 = vmul.f32 %v310, %v357
    %v423 = vmul.f32 %v311, %v362
    %v424 = vmul.f32 %v312, %v367
    %v425 = vmul.f32 %v313, %v372
    %v426 = vmul.f32 %v314, %v377
    %v427 = vmul.f32 %v315, %v382
    %v428 = vmul.f32 %v316, %v387
    %v429 = vmul.f32 %v317, %v392
    %v430 = vmul.f32 %v318, %v397
    %v431 = vmul.f32 %v319, %v402
    %v432 = vmul.f32 %v320, %v407
    %v433 = vmul.f32 %v321, %v412
    %v434 = vmul.f32 %v322, %v417
    %v435 = vld [vmem:[%s5] sm:$0x1]
    %v437 = vperm.slane %v435, 0
    %v439 = vadd.f32 %v419, %v437
    %v440 = vadd.f32 %v420, %v437
    %v441 = vadd.f32 %v421, %v437
    %v442 = vadd.f32 %v422, %v437
    %v443 = vadd.f32 %v423, %v437
    %v444 = vadd.f32 %v424, %v437
    %v445 = vadd.f32 %v425, %v437
    %v446 = vadd.f32 %v426, %v437
    %v447 = vadd.f32 %v427, %v437
    %v448 = vadd.f32 %v428, %v437
    %v449 = vadd.f32 %v429, %v437
    %v450 = vadd.f32 %v430, %v437
    %v451 = vadd.f32 %v431, %v437
    %v452 = vadd.f32 %v432, %v437
    %v453 = vadd.f32 %v433, %v437
    %v454 = vadd.f32 %v434, %v437
    %s455 = sld [smem:[#allocation5]]
    %vm456 = vcmp.gt.f32.partialorder %v439, 0.0
    %vm457 = vcmp.gt.f32.partialorder %v440, 0.0
    %vm458 = vcmp.gt.f32.partialorder %v441, 0.0
    %vm459 = vcmp.gt.f32.partialorder %v442, 0.0
    %vm460 = vcmp.gt.f32.partialorder %v443, 0.0
    %vm461 = vcmp.gt.f32.partialorder %v444, 0.0
    %vm462 = vcmp.gt.f32.partialorder %v445, 0.0
    %vm463 = vcmp.gt.f32.partialorder %v446, 0.0
    %vm464 = vcmp.gt.f32.partialorder %v447, 0.0
    %vm465 = vcmp.gt.f32.partialorder %v448, 0.0
    %vm466 = vcmp.gt.f32.partialorder %v449, 0.0
    %vm467 = vcmp.gt.f32.partialorder %v450, 0.0
    %vm468 = vcmp.gt.f32.partialorder %v451, 0.0
    %vm469 = vcmp.gt.f32.partialorder %v452, 0.0
    %vm470 = vcmp.gt.f32.partialorder %v453, 0.0
    %vm471 = vcmp.gt.f32.partialorder %v454, 0.0
    %v472 = vstv %s455
    %v473 = vmul.f32 %v472, %v439
    %v474 = vmul.f32 %v472, %v440
    %v475 = vmul.f32 %v472, %v441
    %v476 = vmul.f32 %v472, %v442
    %v477 = vmul.f32 %v472, %v443
    %v478 = vmul.f32 %v472, %v444
    %v479 = vmul.f32 %v472, %v445
    %v480 = vmul.f32 %v472, %v446
    %v481 = vmul.f32 %v472, %v447
    %v482 = vmul.f32 %v472, %v448
    %v483 = vmul.f32 %v472, %v449
    %v484 = vmul.f32 %v472, %v450
    %v485 = vmul.f32 %v472, %v451
    %v486 = vmul.f32 %v472, %v452
    %v487 = vmul.f32 %v472, %v453
    %v488 = vmul.f32 %v472, %v454
    %v489 = vsel %vm456, %v439, %v473
    %v490 = vsel %vm457, %v440, %v474
    %v491 = vsel %vm458, %v441, %v475
    %v492 = vsel %vm459, %v442, %v476
    %v493 = vsel %vm460, %v443, %v477
    %v494 = vsel %vm461, %v444, %v478
    %v495 = vsel %vm462, %v445, %v479
    %v496 = vsel %vm463, %v446, %v480
    %v497 = vsel %vm464, %v447, %v481
    %v498 = vsel %vm465, %v448, %v482
    %v499 = vsel %vm466, %v449, %v483
    %v500 = vsel %vm467, %v450, %v484
    %v501 = vsel %vm468, %v451, %v485
    %v502 = vsel %vm469, %v452, %v486
    %v503 = vsel %vm470, %v453, %v487
    %v504 = vsel %vm471, %v454, %v488
    %505 = vst [vmem:[%s7] sm:$0xff] %v489
    %506 = vst [vmem:[%s7 + $0x8] sm:$0xff] %v490
    %507 = vst [vmem:[%s7 + $0x10] sm:$0xff] %v491
    %508 = vst [vmem:[%s7 + $0x18] sm:$0xff] %v492
    %509 = vst [vmem:[%s7 + $0x20] sm:$0xff] %v493
    %510 = vst [vmem:[%s7 + $0x28] sm:$0xff] %v494
    %511 = vst [vmem:[%s7 + $0x30] sm:$0xff] %v495
    %512 = vst [vmem:[%s7 + $0x38] sm:$0xff] %v496
    %513 = vst [vmem:[%s7 + $0x40] sm:$0xff] %v497
    %514 = vst [vmem:[%s7 + $0x48] sm:$0xff] %v498
    %515 = vst [vmem:[%s7 + $0x50] sm:$0xff] %v499
    %516 = vst [vmem:[%s7 + $0x58] sm:$0xff] %v500
    %517 = vst [vmem:[%s7 + $0x60] sm:$0xff] %v501
    %518 = vst [vmem:[%s7 + $0x68] sm:$0xff] %v502
    %519 = vst [vmem:[%s7 + $0x70] sm:$0xff] %v503
    %520 = vst [vmem:[%s7 + $0x78] sm:$0xff] %v504
  $region33: #{encoder_dgi_forward.3} parent=0 // pred_fallthru
    _
  // Predicated region
  $region34: #{encoder_dgi_forward.3} parent=0 // pred_check
    _
  $region35: #{encoder_dgi_forward.3} parent=0 // pred_check_branch
    %522 = sbr.rel (0) target = $region37
  $region36: #{encoder_dgi_forward.3} parent=0 // pred_region
    _
  $region37: #{encoder_dgi_forward.3} parent=0 // pred_fallthru
    _
  // Predicated region
  $region38: #{encoder_dgi_forward.3} parent=0 // pred_check
    _
  $region39: #{encoder_dgi_forward.3} parent=0 // pred_check_branch
    %524 = sbr.rel (0) target = $region41
  $region40: #{encoder_dgi_forward.3} parent=0 // pred_region
    _
  $region41: #{encoder_dgi_forward.3} parent=0 // pred_fallthru
    _

// kernel: encoder_dgi_forward.2
$region0: #{encoder_dgi_forward.2}
  #allocation0 [shape = 'u32[]', space=smem, size = 0x4, offset = 0x4, fixed_abs, tag = 'smem constant byte address 0x4 - core index']
  #allocation1 [shape = 'u32[72,128]{1,0:T(1,128)}', space=vmem, size = 0x9000, scoped, tag = 'internal scratch']
  %s0 = inlined_call_operand.vmem [shape: bf16[128,128], index: 0, kind: input, shape index: {}]
  %s1 = inlined_call_operand.vmem [shape: bf16[128,128], index: 1, kind: input, shape index: {}]
  %s2 = inlined_call_operand.vmem [shape: bf16[128,128], index: 2, kind: output, shape index: {}]
  %s3 = sld [smem:[#allocation0]]
  $region18: #{encoder_dgi_forward.2} parent=0
    _
  %s5 = ssub.s32 1, %s3
  %s6 = scalar_select 0, %s5, %s3
  // Predicated region
  $region2: #{encoder_dgi_forward.2} parent=0 // pred_check
    _
  $region3: #{encoder_dgi_forward.2} parent=0 // pred_check_branch
    %8 = sbr.rel (0) target = $region5
  $region4: #{encoder_dgi_forward.2} parent=0 // pred_region
    _
  $region5: #{encoder_dgi_forward.2} parent=0 // pred_fallthru
    _
  // Predicated region
  $region6: #{encoder_dgi_forward.2} parent=0 // pred_check
    _
  $region7: #{encoder_dgi_forward.2} parent=0 // pred_check_branch
    %10 = sbr.rel (0) target = $region9
  $region8: #{encoder_dgi_forward.2} parent=0 // pred_region
    _
  $region9: #{encoder_dgi_forward.2} parent=0 // pred_fallthru
    _
  %v11 = vld [vmem:[%s0] sm:$0xf]
  %v12 = vld [vmem:[%s0 + $0x4] sm:$0xf]
  %v13 = vld [vmem:[%s0 + $0x8] sm:$0xf]
  %v14 = vld [vmem:[%s0 + $0xc] sm:$0xf]
  %v15 = vld [vmem:[%s0 + $0x10] sm:$0xf]
  %v16 = vld [vmem:[%s0 + $0x14] sm:$0xf]
  %v17 = vld [vmem:[%s0 + $0x18] sm:$0xf]
  %v18 = vld [vmem:[%s0 + $0x1c] sm:$0xf]
  %v19 = vld [vmem:[%s0 + $0x20] sm:$0xf]
  %v20 = vld [vmem:[%s0 + $0x24] sm:$0xf]
  %v21 = vld [vmem:[%s0 + $0x28] sm:$0xf]
  %v22 = vld [vmem:[%s0 + $0x2c] sm:$0xf]
  %v23 = vld [vmem:[%s0 + $0x30] sm:$0xf]
  %v24 = vld [vmem:[%s0 + $0x34] sm:$0xf]
  %v25 = vld [vmem:[%s0 + $0x38] sm:$0xf]
  %v26 = vld [vmem:[%s0 + $0x3c] sm:$0xf]
  %v27 = vld [vmem:[%s1] sm:$0xf]
  %v28 = vld [vmem:[%s1 + $0x4] sm:$0xf]
  %v29 = vld [vmem:[%s1 + $0x8] sm:$0xf]
  %v30 = vld [vmem:[%s1 + $0xc] sm:$0xf]
  %v31 = vld [vmem:[%s1 + $0x10] sm:$0xf]
  %v32 = vld [vmem:[%s1 + $0x14] sm:$0xf]
  %v33 = vld [vmem:[%s1 + $0x18] sm:$0xf]
  %v34 = vld [vmem:[%s1 + $0x1c] sm:$0xf]
  %v35 = vld [vmem:[%s1 + $0x20] sm:$0xf]
  %v36 = vld [vmem:[%s1 + $0x24] sm:$0xf]
  %v37 = vld [vmem:[%s1 + $0x28] sm:$0xf]
  %v38 = vld [vmem:[%s1 + $0x2c] sm:$0xf]
  %v39 = vld [vmem:[%s1 + $0x30] sm:$0xf]
  %v40 = vld [vmem:[%s1 + $0x34] sm:$0xf]
  %v41 = vld [vmem:[%s1 + $0x38] sm:$0xf]
  %v42 = vld [vmem:[%s1 + $0x3c] sm:$0xf]
  %v59 = vunpack.c.l.b16 %v11
  %v60 = vunpack.c.l.b16 %v12
  %v61 = vunpack.c.l.b16 %v13
  %v62 = vunpack.c.l.b16 %v14
  %v63 = vunpack.c.l.b16 %v15
  %v64 = vunpack.c.l.b16 %v16
  %v65 = vunpack.c.l.b16 %v17
  %v66 = vunpack.c.l.b16 %v18
  %v67 = vunpack.c.l.b16 %v19
  %v68 = vunpack.c.l.b16 %v20
  %v69 = vunpack.c.l.b16 %v21
  %v70 = vunpack.c.l.b16 %v22
  %v71 = vunpack.c.l.b16 %v23
  %v72 = vunpack.c.l.b16 %v24
  %v73 = vunpack.c.l.b16 %v25
  %v74 = vunpack.c.l.b16 %v26
  %v75 = vpack.c.b16 %v60, %v59
  %v76 = vpack.c.b16 %v62, %v61
  %v77 = vpack.c.b16 %v64, %v63
  %v78 = vpack.c.b16 %v66, %v65
  %v79 = vpack.c.b16 %v68, %v67
  %v80 = vpack.c.b16 %v70, %v69
  %v81 = vpack.c.b16 %v72, %v71
  %v82 = vpack.c.b16 %v74, %v73
  %v107 = vunpack.c.l.b16 %v27
  %v108 = vunpack.c.l.b16 %v28
  %v109 = vunpack.c.l.b16 %v29
  %v110 = vunpack.c.l.b16 %v30
  %v111 = vunpack.c.l.b16 %v31
  %v112 = vunpack.c.l.b16 %v32
  %v113 = vunpack.c.l.b16 %v33
  %v114 = vunpack.c.l.b16 %v34
  %v115 = vunpack.c.l.b16 %v35
  %v116 = vunpack.c.l.b16 %v36
  %v117 = vunpack.c.l.b16 %v37
  %v118 = vunpack.c.l.b16 %v38
  %v119 = vunpack.c.l.b16 %v39
  %v120 = vunpack.c.l.b16 %v40
  %v121 = vunpack.c.l.b16 %v41
  %v122 = vunpack.c.l.b16 %v42
  %v123 = vpack.c.b16 %v108, %v107
  %v124 = vpack.c.b16 %v110, %v109
  %v125 = vpack.c.b16 %v112, %v111
  %v126 = vpack.c.b16 %v114, %v113
  %v127 = vpack.c.b16 %v116, %v115
  %v128 = vpack.c.b16 %v118, %v117
  %v129 = vpack.c.b16 %v120, %v119
  %v130 = vpack.c.b16 %v122, %v121
  %139 = vmatpush.bf16.msra.mxu0 %v130
  %140 = vmatpush.bf16.msra.mxu0 %v129
  %141 = vmatpush.bf16.msra.mxu0 %v128
  %142 = vmatpush.bf16.msra.mxu0 %v127
  %143 = vmatpush.bf16.msra.mxu0 %v126
  %144 = vmatpush.bf16.msra.mxu0 %v125
  %145 = vmatpush.bf16.msra.mxu0 %v124
  %146 = vmatpush.bf16.msra.mxu0 %v123
  %147 = vmatmul.bf16.gmra.mxu0 %v75
  %v148 = vpop.f32.mrf.mxu0
  %v149 = vadd.f32 0.0, %v148
  %v150 = vpop.f32.mrf.mxu0
  %v151 = vadd.f32 0.0, %v150
  %152 = vmatmul.bf16.gmra.mxu0 %v76
  %v153 = vpop.f32.mrf.mxu0
  %v154 = vadd.f32 0.0, %v153
  %v155 = vpop.f32.mrf.mxu0
  %v156 = vadd.f32 0.0, %v155
  %157 = vmatmul.bf16.gmra.mxu0 %v77
  %v158 = vpop.f32.mrf.mxu0
  %v159 = vadd.f32 0.0, %v158
  %v160 = vpop.f32.mrf.mxu0
  %v161 = vadd.f32 0.0, %v160
  %162 = vmatmul.bf16.gmra.mxu0 %v78
  %v163 = vpop.f32.mrf.mxu0
  %v164 = vadd.f32 0.0, %v163
  %v165 = vpop.f32.mrf.mxu0
  %v166 = vadd.f32 0.0, %v165
  %167 = vmatmul.bf16.gmra.mxu0 %v79
  %v168 = vpop.f32.mrf.mxu0
  %v169 = vadd.f32 0.0, %v168
  %v170 = vpop.f32.mrf.mxu0
  %v171 = vadd.f32 0.0, %v170
  %172 = vmatmul.bf16.gmra.mxu0 %v80
  %v173 = vpop.f32.mrf.mxu0
  %v174 = vadd.f32 0.0, %v173
  %v175 = vpop.f32.mrf.mxu0
  %v176 = vadd.f32 0.0, %v175
  %177 = vmatmul.bf16.gmra.mxu0 %v81
  %v178 = vpop.f32.mrf.mxu0
  %v179 = vadd.f32 0.0, %v178
  %v180 = vpop.f32.mrf.mxu0
  %v181 = vadd.f32 0.0, %v180
  %182 = vmatmul.bf16.gmra.mxu0 %v82
  %v183 = vpop.f32.mrf.mxu0
  %v184 = vadd.f32 0.0, %v183
  %v185 = vpop.f32.mrf.mxu0
  %v186 = vadd.f32 0.0, %v185
  %187 = vdwg.mxu0
  %v188 = vpack.c.bf16 %v149, %v149
  %v189 = vpack.c.bf16 %v151, %v151
  %v190 = vpack.c.bf16 %v154, %v154
  %v191 = vpack.c.bf16 %v156, %v156
  %v192 = vpack.c.bf16 %v159, %v159
  %v193 = vpack.c.bf16 %v161, %v161
  %v194 = vpack.c.bf16 %v164, %v164
  %v195 = vpack.c.bf16 %v166, %v166
  %v196 = vpack.c.bf16 %v169, %v169
  %v197 = vpack.c.bf16 %v171, %v171
  %v198 = vpack.c.bf16 %v174, %v174
  %v199 = vpack.c.bf16 %v176, %v176
  %v200 = vpack.c.bf16 %v179, %v179
  %v201 = vpack.c.bf16 %v181, %v181
  %v202 = vpack.c.bf16 %v184, %v184
  %v203 = vpack.c.bf16 %v186, %v186
  %204 = vst [vmem:[%s2] sm:$0xf] %v188
  %205 = vst [vmem:[%s2 + $0x4] sm:$0xf] %v189
  %206 = vst [vmem:[%s2 + $0x8] sm:$0xf] %v190
  %207 = vst [vmem:[%s2 + $0xc] sm:$0xf] %v191
  %208 = vst [vmem:[%s2 + $0x10] sm:$0xf] %v192
  %209 = vst [vmem:[%s2 + $0x14] sm:$0xf] %v193
  %210 = vst [vmem:[%s2 + $0x18] sm:$0xf] %v194
  %211 = vst [vmem:[%s2 + $0x1c] sm:$0xf] %v195
  %212 = vst [vmem:[%s2 + $0x20] sm:$0xf] %v196
  %213 = vst [vmem:[%s2 + $0x24] sm:$0xf] %v197
  %214 = vst [vmem:[%s2 + $0x28] sm:$0xf] %v198
  %215 = vst [vmem:[%s2 + $0x2c] sm:$0xf] %v199
  %216 = vst [vmem:[%s2 + $0x30] sm:$0xf] %v200
  %217 = vst [vmem:[%s2 + $0x34] sm:$0xf] %v201
  %218 = vst [vmem:[%s2 + $0x38] sm:$0xf] %v202
  %219 = vst [vmem:[%s2 + $0x3c] sm:$0xf] %v203
  // Predicated region
  $region10: #{encoder_dgi_forward.2} parent=0 // pred_check
    _
  $region11: #{encoder_dgi_forward.2} parent=0 // pred_check_branch
    %221 = sbr.rel (0) target = $region13
  $region12: #{encoder_dgi_forward.2} parent=0 // pred_region
    _
  $region13: #{encoder_dgi_forward.2} parent=0 // pred_fallthru
    _
  // Predicated region
  $region14: #{encoder_dgi_forward.2} parent=0 // pred_check
    _
  $region15: #{encoder_dgi_forward.2} parent=0 // pred_check_branch
    %223 = sbr.rel (0) target = $region17
  $region16: #{encoder_dgi_forward.2} parent=0 // pred_region
    _
  $region17: #{encoder_dgi_forward.2} parent=0 // pred_fallthru
    _

</llo_original>
